<compile_context>
chip_gen: v7x
topology: tpu7x:2x2x1
jax: 0.10.0
libtpu: 0.0.40
codegen_flags: <defaults>
</compile_context>

<pallas_src>
import jax
import jax.numpy as jnp
from jax.experimental import pallas as pl
from jax.experimental.pallas import tpu as pltpu

_LANES = 128


def _gate_mlp(x, w1, b1, w2, b2):
    # MLP_Block: Linear -> ReLU -> Linear -> Sigmoid (the *2 is applied by caller).
    h = jnp.maximum(jnp.dot(x, w1, preferred_element_type=jnp.float32) + b1, 0.0)
    z = jnp.dot(h, w2, preferred_element_type=jnp.float32) + b2
    return jax.nn.sigmoid(z)


def _fs_kernel(emb_ref, gt1_ref, gt2_ref, out1_ref, out2_ref):
    # Two independent reads of the emb tile keep live ranges short (a tm>=1024
    # tile is far more than 64 vregs); re-reading VMEM is effectively free in
    # this DMA-bound kernel (3 vld slots / cycle).
    out1_ref[...] = (emb_ref[...] * gt1_ref[...]).astype(out1_ref.dtype)
    out2_ref[...] = (emb_ref[...] * gt2_ref[...]).astype(out2_ref.dtype)


def _choose_tm(Mf, tm, sub):
    """Pick a folded-row tile size: (sub,128)-aligned, >=2 grid steps if possible."""
    if Mf <= sub:
        return Mf                                  # single tile == full array dims
    tm = min(tm, Mf)
    tm = max(sub, (tm // sub) * sub)
    # Prefer at least 2 grid steps so the "parallel" axis can feed both
    # TensorCores on megacore parts (v7x); irrelevant but harmless elsewhere.
    if pl.cdiv(Mf, tm) < 2 and Mf >= 2 * sub:
        tm = max(sub, pl.cdiv(pl.cdiv(Mf, 2), sub) * sub)
    return tm


def feature_selection_forward(flat_emb, params, *, tm=4096):
    """flat_emb: (B, N1, N2, feature_dim).  Returns (feature1, feature2)."""
    B, N1, N2, D = flat_emb.shape
    M = B * N1 * N2
    itemsize = jnp.dtype(flat_emb.dtype).itemsize
    sub = max(8, 32 // itemsize)                   # 8 for f32, 16 for bf16

    # --- gates: hoisted out of the kernel (constant context) ----------------
    gt1 = _gate_mlp(params["fs1_ctx_bias"], params["fs1_w1"], params["fs1_b1"],
                    params["fs1_w2"], params["fs1_b2"]) * 2.0        # (1, D)
    gt2 = _gate_mlp(params["fs2_ctx_bias"], params["fs2_w1"], params["fs2_b1"],
                    params["fs2_w2"], params["fs2_b2"]) * 2.0        # (1, D)

    # --- lane-dense folding --------------------------------------------------
    # Fold F consecutive D-wide rows onto the 128-lane axis (free reshape).
    # If D does not divide 128, pad the feature dim up to the next power of two
    # (a divisor of 128) / multiple of 128 so stores stay unmasked.
    if D <= _LANES:
        Dp = 1 << (D - 1).bit_length()             # next pow2 >= D; divides 128
        F = _LANES // Dp
        L = _LANES
    else:
        Dp = pl.cdiv(D, _LANES) * _LANES
        F = 1
        L = Dp

    emb2d = flat_emb.reshape(M, D)
    if Dp != D:                                    # non-default configs only
        emb2d = jnp.pad(emb2d, ((0, 0), (0, Dp - D)))
        gt1 = jnp.pad(gt1, ((0, 0), (0, Dp - D)))
        gt2 = jnp.pad(gt2, ((0, 0), (0, Dp - D)))

    Mr = M
    if M % F != 0:                                 # no-op in the common case
        pad_rows = F - (M % F)
        emb2d = jnp.pad(emb2d, ((0, pad_rows), (0, 0)))
        Mr = M + pad_rows
    Mf = Mr // F
    emb_folded = emb2d.reshape(Mf, L)              # free row-major reshape

    # Folded lane l <-> original feature (l % Dp): tile the gate F times.
    gt1f = jnp.tile(gt1, (1, F)).astype(jnp.float32)     # (1, L)
    gt2f = jnp.tile(gt2, (1, F)).astype(jnp.float32)     # (1, L)

    tm = _choose_tm(Mf, tm, sub)
    grid = (pl.cdiv(Mf, tm),)                      # ragged last block handled by Pallas

    # Pipeline footprint: (1 in + 2 out) x 2 buffers x tile; gates are tiny.
    pipeline_bytes = 3 * 2 * tm * L * itemsize + 2 * 2 * L * 4
    vmem_limit = int(min(56 << 20, max(32 << 20, pipeline_bytes + (4 << 20))))

    row_spec = pl.BlockSpec((tm, L), lambda i: (i, 0))
    gate_spec = pl.BlockSpec((1, L), lambda i: (0, 0))

    out1, out2 = pl.pallas_call(
        _fs_kernel,
        out_shape=(jax.ShapeDtypeStruct((Mf, L), flat_emb.dtype),
                   jax.ShapeDtypeStruct((Mf, L), flat_emb.dtype)),
        grid_spec=pltpu.PrefetchScalarGridSpec(
            num_scalar_prefetch=0,
            grid=grid,
            in_specs=[row_spec, gate_spec, gate_spec],
            out_specs=[row_spec, row_spec],
        ),
        compiler_params=pltpu.CompilerParams(
            dimension_semantics=("parallel",),
            vmem_limit_bytes=vmem_limit),
    )(emb_folded, gt1f, gt2f)

    def unfold(o):
        o = o.reshape(Mf * F, Dp)                  # free reshape
        if Mr != M:
            o = o[:M]                              # only when M % F != 0
        if Dp != D:
            o = o[:, :D]                           # only when D was padded
        return o.reshape(B, N1, N2, D)

    return unfold(out1), unfold(out2)


def init_params(key, vec_size, hidden, feature_dim):
    ks = jax.random.split(key, 10)

    def uniform(k, shape, fan_in):
        bound = 1.0 / jnp.sqrt(fan_in)
        return jax.random.uniform(k, shape, jnp.float32, -bound, bound)

    return {
        # The module initializes fs*_ctx_bias to zeros; small random values here
        # so the correctness check exercises the full gate path.
        "fs1_ctx_bias": 0.1 * jax.random.normal(ks[8], (1, vec_size), jnp.float32),
        "fs2_ctx_bias": 0.1 * jax.random.normal(ks[9], (1, vec_size), jnp.float32),
        # fs1_gate MLP: Linear(V->H), ReLU, Linear(H->D), Sigmoid
        "fs1_w1": uniform(ks[0], (vec_size, hidden), vec_size),
        "fs1_b1": uniform(ks[1], (1, hidden), vec_size),
        "fs1_w2": uniform(ks[2], (hidden, feature_dim), hidden),
        "fs1_b2": uniform(ks[3], (1, feature_dim), hidden),
        # fs2_gate MLP
        "fs2_w1": uniform(ks[4], (vec_size, hidden), vec_size),
        "fs2_b1": uniform(ks[5], (1, hidden), vec_size),
        "fs2_w2": uniform(ks[6], (hidden, feature_dim), hidden),
        "fs2_b2": uniform(ks[7], (1, feature_dim), hidden),
    }


def reference_forward(flat_emb, params):
    B, N1, N2, _ = flat_emb.shape
    V = params["fs1_ctx_bias"].shape[-1]
    fs1_in = jnp.broadcast_to(params["fs1_ctx_bias"], (B, N1, N2, V))
    fs2_in = jnp.broadcast_to(params["fs2_ctx_bias"], (B, N1, N2, V))
    gt1 = _gate_mlp(fs1_in, params["fs1_w1"], params["fs1_b1"],
                    params["fs1_w2"], params["fs1_b2"]) * 2.0
    gt2 = _gate_mlp(fs2_in, params["fs2_w1"], params["fs2_b1"],
                    params["fs2_w2"], params["fs2_b2"]) * 2.0
    return flat_emb * gt1, flat_emb * gt2


def _check(B, N1, N2, feature_dim, vec_size, hidden, seed):
    key = jax.random.PRNGKey(seed)
    k_emb, k_par = jax.random.split(key)
    flat_emb = jax.random.normal(k_emb, (B, N1, N2, feature_dim), jnp.float32)
    params = init_params(k_par, vec_size, hidden, feature_dim)

    f1, f2 = feature_selection_forward(flat_emb, params)
    jax.block_until_ready((f1, f2))

    r1, r2 = reference_forward(flat_emb, params)
    assert f1.shape == r1.shape and f2.shape == r2.shape
    assert jnp.allclose(f1, r1, atol=1e-5, rtol=1e-5)
    assert jnp.allclose(f2, r2, atol=1e-5, rtol=1e-5)


if __name__ == "__main__":
    # Default, lane-aligned config: flat_emb (B, N1, N2, feature_dim).
    _check(B=2, N1=4, N2=16, feature_dim=16, vec_size=32, hidden=64, seed=0)
    # Non-aligned config: M % F != 0 and D does not divide 128 — exercises the
    # ragged last block (OOB writes dropped) and the feature-dim padding path.
    _check(B=2, N1=3, N2=5, feature_dim=12, vec_size=32, hidden=64, seed=0)

    print("KERNEL_OK")
</pallas_src>

<mosaic_0001>
module attributes {stable_mosaic.version = 11 : i64} {
  func.func @_fs_kernel(%arg0: i32, %arg1: memref<8x128xf32, #tpu.memory_space<vmem>>, %arg2: memref<1x128xf32, #tpu.memory_space<vmem>>, %arg3: memref<1x128xf32, #tpu.memory_space<vmem>>, %arg4: memref<8x128xf32, #tpu.memory_space<vmem>>, %arg5: memref<8x128xf32, #tpu.memory_space<vmem>>) attributes {dimension_semantics = [#tpu.dimension_semantics<parallel>], iteration_bounds = array<i64: 2>, scalar_prefetch = 0 : i64, scratch_operands = 0 : i64, tpu.core_type = #tpu.core_type<tc>, window_params = [{transform_indices = @transform_0, window_bounds = array<i64: 8, 128>}, {pipeline_mode = #tpu.pipeline_mode<synchronous>, transform_indices = @transform_1, window_bounds = array<i64: 1, 128>}, {pipeline_mode = #tpu.pipeline_mode<synchronous>, transform_indices = @transform_2, window_bounds = array<i64: 1, 128>}, {transform_indices = @transform_3, window_bounds = array<i64: 8, 128>}, {transform_indices = @transform_4, window_bounds = array<i64: 8, 128>}]} {
    %c0 = arith.constant 0 : index
    %c0_0 = arith.constant 0 : index
    %0 = vector.load %arg1[%c0, %c0_0] : memref<8x128xf32, #tpu.memory_space<vmem>>, vector<8x128xf32>
    %c0_1 = arith.constant 0 : index
    %c0_2 = arith.constant 0 : index
    %1 = vector.load %arg2[%c0_1, %c0_2] : memref<1x128xf32, #tpu.memory_space<vmem>>, vector<1x128xf32>
    %2 = vector.broadcast %1 : vector<1x128xf32> to vector<8x128xf32>
    %3 = arith.mulf %0, %2 : vector<8x128xf32>
    %c0_3 = arith.constant 0 : index
    %c0_4 = arith.constant 0 : index
    %4 = vector.load %arg4[%c0_3, %c0_4] : memref<8x128xf32, #tpu.memory_space<vmem>>, vector<8x128xf32>
    tpu.vector_store %arg4[%c0_3, %c0_4], %3 {strides = array<i32>} : memref<8x128xf32, #tpu.memory_space<vmem>>, vector<8x128xf32>,
    %c0_5 = arith.constant 0 : index
    %c0_6 = arith.constant 0 : index
    %5 = vector.load %arg1[%c0_5, %c0_6] : memref<8x128xf32, #tpu.memory_space<vmem>>, vector<8x128xf32>
    %c0_7 = arith.constant 0 : index
    %c0_8 = arith.constant 0 : index
    %6 = vector.load %arg3[%c0_7, %c0_8] : memref<1x128xf32, #tpu.memory_space<vmem>>, vector<1x128xf32>
    %7 = vector.broadcast %6 : vector<1x128xf32> to vector<8x128xf32>
    %8 = arith.mulf %5, %7 : vector<8x128xf32>
    %c0_9 = arith.constant 0 : index
    %c0_10 = arith.constant 0 : index
    %9 = vector.load %arg5[%c0_9, %c0_10] : memref<8x128xf32, #tpu.memory_space<vmem>>, vector<8x128xf32>
    tpu.vector_store %arg5[%c0_9, %c0_10], %8 {strides = array<i32>} : memref<8x128xf32, #tpu.memory_space<vmem>>, vector<8x128xf32>,
    return
  }
  func.func @transform_0(%arg0: i32) -> (i32, i32) {
    %c0_i32 = arith.constant 0 : i32
    %c0_i32_0 = arith.constant 0 : i32
    return %arg0, %c0_i32 : i32, i32
  }
  func.func @transform_1(%arg0: i32) -> (i32, i32) {
    %c0_i32 = arith.constant 0 : i32
    %c0_i32_0 = arith.constant 0 : i32
    %c0_i32_1 = arith.constant 0 : i32
    return %c0_i32, %c0_i32_0 : i32, i32
  }
  func.func @transform_2(%arg0: i32) -> (i32, i32) {
    %c0_i32 = arith.constant 0 : i32
    %c0_i32_0 = arith.constant 0 : i32
    %c0_i32_1 = arith.constant 0 : i32
    return %c0_i32, %c0_i32_0 : i32, i32
  }
  func.func @transform_3(%arg0: i32) -> (i32, i32) {
    %c0_i32 = arith.constant 0 : i32
    %c0_i32_0 = arith.constant 0 : i32
    return %arg0, %c0_i32 : i32, i32
  }
  func.func @transform_4(%arg0: i32) -> (i32, i32) {
    %c0_i32 = arith.constant 0 : i32
    %c0_i32_0 = arith.constant 0 : i32
    return %arg0, %c0_i32 : i32, i32
  }
}

</mosaic_0001>

<llo_original>
// kernel: tpu_custom_call.1
$region0: #{tpu_custom_call.1}
  #allocation0 [shape = 'u32[]', space=smem, size = 0x4, offset = 0x4, fixed_abs, tag = 'smem constant byte address 0x4 - core index']
  #allocation1 [shape = 'u32[144,128]{1,0:T(1,128)}', space=vmem, size = 0x12000, scoped, tag = 'internal scratch']
  %s0 = inlined_call_operand.hbm [shape: f32[16,128], index: 0, kind: input, shape index: {}]
  %s1 = inlined_call_operand.vmem [shape: f32[1,128], index: 1, kind: input, shape index: {}]
  %s2 = inlined_call_operand.vmem [shape: f32[1,128], index: 2, kind: input, shape index: {}]
  %s3 = inlined_call_operand.hbm [shape: f32[16,128], index: 3, kind: output, shape index: {0}]
  %s4 = inlined_call_operand.hbm [shape: f32[16,128], index: 4, kind: output, shape index: {1}]
  %5 = xla_tuple %s3, %s4
  %s6 = sld [smem:[#allocation0]]
  $region57: #{tpu_custom_call.1} parent=0
    _
  %s8 = ssub.s32 1, %s6
  %s9 = scalar_select 0, %s8, %s6
  $region1: #{tpu_custom_call.1} parent=0
    #allocation2 [shape = 'u8[8192]{0}', space=vmem, size = 0x2000, scoped, tag = 'input window, operand 0']
    #allocation3 [shape = 's32[2]{0}', space=sflag, size = 0x8, scoped, tag = 'scoped memory for tpu_custom_call.1']
    #allocation4 [shape = 's32[2]{0}', space=sflag, size = 0x8, scoped, tag = 'scoped memory for tpu_custom_call.1']
    #allocation5 [shape = 'u8[8192]{0}', space=vmem, size = 0x2000, scoped, tag = 'output window, operand 0']
    #allocation6 [shape = 'u8[8192]{0}', space=vmem, size = 0x2000, scoped, tag = 'output window, operand 1']
    #allocation7 [shape = 's32[2]{0}', space=sflag, size = 0x8, scoped, tag = 'scoped memory for tpu_custom_call.1']
    %10 = vsyncpa [#allocation3], 0
    %s11 = scalar_lea.sflag [#allocation3], 1
    %12 = vsyncpa %s11, 0
    %13 = vsyncpa [#allocation4], 0
    %s14 = scalar_lea.sflag [#allocation4], 1
    %15 = vsyncpa %s14, 0
    %16 = vsyncpa [#allocation7], 0
    %s17 = scalar_lea.sflag [#allocation7], 1
    %18 = vsyncpa %s17, 0
    loop: start=0, step=1, limit=4
    $region2: #{tpu_custom_call.1} parent=1 // loop_pre_header
      _
    $region3: #{tpu_custom_call.1} parent=1 // loop_header
      %s20 = sphi 0, %s24
      %p21 = scmp.ge.s32.totalorder %s20, 4
      %s30 = sphi 0, %s32
      %s33 = sphi 0, %s30
      %s34 = sphi 0, %s33
      %s50 = sphi 0, %s34
      %s54 = sphi 0, %s54
      %s56 = sphi 0, %s54
      %s57 = sphi 0, %s56
      %s71 = sphi 0, %s57
      %s75 = sphi 0, %s75
      %s77 = sphi 0, %s75
      %s78 = sphi 0, %s77
      %s92 = sphi 0, %s78
      %s98 = sphi 0, %s100
      %s101 = sphi 0, %s98
      %s102 = sphi 0, %s101
      %s118 = sphi 0, %s102
      %s124 = sphi 0, %s126
      %s127 = sphi 0, %s124
      %s128 = sphi 0, %s127
      %s144 = sphi 0, %s128
    $region4: #{tpu_custom_call.1} parent=1 // loop_header_branch
      %23 = sbr.rel (%p21) target = $region8
    $region5: #{tpu_custom_call.1} parent=1 // loop_body
      %s25 = ssub.s32 %s20, 1
      %s26 = ssub.s32 %s20, 2
      %s27 = sadd.s32 %s20, 1
      %s28 = ssub.s32 %s20, %s27
      %p29 = scmp.eq.s32.totalorder %s28, 0
      %s31 = sadd.s32 %s30, 1
      %s32 = scalar_select %p29, %s30, %s31
      %p35 = pneg %p29
      %p36 = scmp.eq.s32.totalorder %s20, 1
      %p37 = por %p35, %p36
      %p38 = scmp.ne.s32.totalorder %s30, %s33
      %p39 = scmp.eq.s32.totalorder %s20, 0
      %p40 = por %p38, %p39
      %p41 = scmp.ne.s32.totalorder %s30, %s33
      %p42 = scmp.eq.s32.totalorder %s25, 1
      %p43 = por %p41, %p42
      %p44 = scmp.ne.s32.totalorder %s33, %s34
      %p45 = scmp.eq.s32.totalorder %s25, 0
      %p46 = por %p44, %p45
      %p47 = scmp.ne.s32.totalorder %s33, %s34
      %p48 = scmp.eq.s32.totalorder %s26, 1
      %p49 = por %p47, %p48
      %p51 = scmp.ne.s32.totalorder %s34, %s50
      %p52 = scmp.eq.s32.totalorder %s26, 0
      %p53 = por %p51, %p52
      %s55 = sadd.s32 %s54, 1
      %p58 = scmp.eq.s32.totalorder %s20, 1
      %p59 = scmp.ne.s32.totalorder %s54, %s56
      %p60 = scmp.eq.s32.totalorder %s20, 0
      %p61 = por %p59, %p60
      %p62 = scmp.ne.s32.totalorder %s54, %s56
      %p63 = scmp.eq.s32.totalorder %s25, 1
      %p64 = por %p62, %p63
      %p65 = scmp.ne.s32.totalorder %s56, %s57
      %p66 = scmp.eq.s32.totalorder %s25, 0
      %p67 = por %p65, %p66
      %p68 = scmp.ne.s32.totalorder %s56, %s57
      %p69 = scmp.eq.s32.totalorder %s26, 1
      %p70 = por %p68, %p69
      %p72 = scmp.ne.s32.totalorder %s57, %s71
      %p73 = scmp.eq.s32.totalorder %s26, 0
      %p74 = por %p72, %p73
      %s76 = sadd.s32 %s75, 1
      %p79 = scmp.eq.s32.totalorder %s20, 1
      %p80 = scmp.ne.s32.totalorder %s75, %s77
      %p81 = scmp.eq.s32.totalorder %s20, 0
      %p82 = por %p80, %p81
      %p83 = scmp.ne.s32.totalorder %s75, %s77
      %p84 = scmp.eq.s32.totalorder %s25, 1
      %p85 = por %p83, %p84
      %p86 = scmp.ne.s32.totalorder %s77, %s78
      %p87 = scmp.eq.s32.totalorder %s25, 0
      %p88 = por %p86, %p87
      %p89 = scmp.ne.s32.totalorder %s77, %s78
      %p90 = scmp.eq.s32.totalorder %s26, 1
      %p91 = por %p89, %p90
      %p93 = scmp.ne.s32.totalorder %s78, %s92
      %p94 = scmp.eq.s32.totalorder %s26, 0
      %p95 = por %p93, %p94
      %s96 = ssub.s32 %s20, %s27
      %p97 = scmp.eq.s32.totalorder %s96, 0
      %s99 = sadd.s32 %s98, 1
      %s100 = scalar_select %p97, %s98, %s99
      %p103 = pneg %p97
      %p104 = scmp.eq.s32.totalorder %s20, 1
      %p105 = por %p103, %p104
      %p106 = scmp.ne.s32.totalorder %s98, %s101
      %p107 = scmp.eq.s32.totalorder %s20, 0
      %p108 = por %p106, %p107
      %p109 = scmp.ne.s32.totalorder %s98, %s101
      %p110 = scmp.eq.s32.totalorder %s25, 1
      %p111 = por %p109, %p110
      %p112 = scmp.ne.s32.totalorder %s101, %s102
      %p113 = scmp.eq.s32.totalorder %s25, 0
      %p114 = por %p112, %p113
      %p115 = scmp.ne.s32.totalorder %s101, %s102
      %p116 = scmp.eq.s32.totalorder %s26, 1
      %p117 = por %p115, %p116
      %p119 = scmp.ne.s32.totalorder %s102, %s118
      %p120 = scmp.eq.s32.totalorder %s26, 0
      %p121 = por %p119, %p120
      %s122 = ssub.s32 %s20, %s27
      %p123 = scmp.eq.s32.totalorder %s122, 0
      %s125 = sadd.s32 %s124, 1
      %s126 = scalar_select %p123, %s124, %s125
      %p129 = pneg %p123
      %p130 = scmp.eq.s32.totalorder %s20, 1
      %p131 = por %p129, %p130
      %p132 = scmp.ne.s32.totalorder %s124, %s127
      %p133 = scmp.eq.s32.totalorder %s20, 0
      %p134 = por %p132, %p133
      %p135 = scmp.ne.s32.totalorder %s124, %s127
      %p136 = scmp.eq.s32.totalorder %s25, 1
      %p137 = por %p135, %p136
      %p138 = scmp.ne.s32.totalorder %s127, %s128
      %p139 = scmp.eq.s32.totalorder %s25, 0
      %p140 = por %p138, %p139
      %p141 = scmp.ne.s32.totalorder %s127, %s128
      %p142 = scmp.eq.s32.totalorder %s26, 1
      %p143 = por %p141, %p142
      %p145 = scmp.ne.s32.totalorder %s128, %s144
      %p146 = scmp.eq.s32.totalorder %s26, 0
      %p147 = por %p145, %p146
      %p148 = scmp.le.s32.totalorder 1, %s20
      %p149 = scmp.lt.s32.totalorder %s20, 3
      %p150 = pnand %p148, %p149
      %p151 = pneg %p150
      // Predicated region
      $region9: #{tpu_custom_call.1} parent=5 // pred_check
        _
      $region10: #{tpu_custom_call.1} parent=5 // pred_check_branch
        %153 = sbr.rel (%p150) target = $region12
      $region11: #{tpu_custom_call.1} parent=5 // pred_region
        %s154 = ssub.s32 %s20, 1
        // Predicated region
        $region13: #{tpu_custom_call.1} parent=11 // pred_check
          %p155 = pneg %p67
        $region14: #{tpu_custom_call.1} parent=11 // pred_check_branch
          %157 = sbr.rel (%p155) target = $region16
        $region15: #{tpu_custom_call.1} parent=11 // pred_region
          _
        $region16: #{tpu_custom_call.1} parent=11 // pred_fallthru
          _
        // Predicated region
        $region17: #{tpu_custom_call.1} parent=11 // pred_check
          %p158 = pneg %p88
        $region18: #{tpu_custom_call.1} parent=11 // pred_check_branch
          %160 = sbr.rel (%p158) target = $region20
        $region19: #{tpu_custom_call.1} parent=11 // pred_region
          _
        $region20: #{tpu_custom_call.1} parent=11 // pred_fallthru
          _
      $region12: #{tpu_custom_call.1} parent=5 // pred_fallthru
        _
      %p161 = scmp.lt.s32.totalorder %s20, 2
      // Predicated region
      $region21: #{tpu_custom_call.1} parent=5 // pred_check
        %p162 = pneg %p161
      $region22: #{tpu_custom_call.1} parent=5 // pred_check_branch
        %164 = sbr.rel (%p162) target = $region24
      $region23: #{tpu_custom_call.1} parent=5 // pred_region
        // Predicated region
        $region25: #{tpu_custom_call.1} parent=23 // pred_check
          %p165 = pneg %p40
        $region26: #{tpu_custom_call.1} parent=23 // pred_check_branch
          %167 = sbr.rel (%p165) target = $region28
        $region27: #{tpu_custom_call.1} parent=23 // pred_region
          %s168 = sand.u32 %s30, 1
          %s169 = scalar_lea.sflag [#allocation3], %s168
          %s170 = sand.u32 %s30, 1
          %s171 = smul.addr %s170, 8
          %s172 = scalar_lea.vmem [#allocation2], %s171
          %s174 = ssub.s32 128, 128
          %175 = vsyncadd %s169, %s174
          %s176 = smul.addr %s20, 128
          %s177 = scalar_lea.hbm %s0, %s176
          %s179 = sshll.u32 %s172, 4
          %s180 = int_to_ptr.vmem [resolvable:$true] %s179
          %182 = dma.hbm_to_vmem [thread:$0]  %s177, 128, %s180, %s169
        $region28: #{tpu_custom_call.1} parent=23 // pred_fallthru
          _
      $region24: #{tpu_custom_call.1} parent=5 // pred_fallthru
        _
      %p183 = scmp.le.s32.totalorder 1, %s20
      %p184 = scmp.lt.s32.totalorder %s20, 3
      %p185 = pnand %p183, %p184
      %p186 = pneg %p185
      // Predicated region
      $region29: #{tpu_custom_call.1} parent=5 // pred_check
        _
      $region30: #{tpu_custom_call.1} parent=5 // pred_check_branch
        %188 = sbr.rel (%p185) target = $region32
      $region31: #{tpu_custom_call.1} parent=5 // pred_region
        %s189 = ssub.s32 %s20, 1
        %s190 = sand.u32 %s33, 1
        %s191 = scalar_lea.sflag [#allocation3], %s190
        %s192 = sand.u32 %s33, 1
        %s193 = smul.addr %s192, 8
        %s194 = scalar_lea.vmem [#allocation2], %s193
        // Predicated region
        $region33: #{tpu_custom_call.1} parent=31 // pred_check
          %p195 = pneg %p46
        $region34: #{tpu_custom_call.1} parent=31 // pred_check_branch
          %197 = sbr.rel (%p195) target = $region36
        $region35: #{tpu_custom_call.1} parent=31 // pred_region
          %198 = dma.done %s191, 128
        $region36: #{tpu_custom_call.1} parent=31 // pred_fallthru
          _
        %s199 = sand.u32 %s33, 1
        %s200 = scalar_lea.sflag [#allocation3], %s199
        %s201 = sand.u32 %s33, 1
        %s202 = smul.addr %s201, 8
        %s203 = scalar_lea.vmem [#allocation2], %s202
        %p204 = pneg %p46
        %p205 = pneg %p43
        %p206 = pneg %p67
        %p207 = pneg %p64
        %p208 = pneg %p88
        %p209 = pneg %p85
        %p210 = pneg %p114
        %p211 = pneg %p111
        %s212 = sand.u32 %s101, 1
        %s213 = scalar_lea.sflag [#allocation4], %s212
        %s214 = sand.u32 %s101, 1
        %s215 = smul.addr %s214, 8
        %s216 = scalar_lea.vmem [#allocation5], %s215
        %p217 = pneg %p140
        %p218 = pneg %p137
        %s219 = sand.u32 %s127, 1
        %s220 = scalar_lea.sflag [#allocation7], %s219
        %s221 = sand.u32 %s127, 1
        %s222 = smul.addr %s221, 8
        %s223 = scalar_lea.vmem [#allocation6], %s222
        %v224 = vld [vmem:[%s194] sm:$0xff]
        %v225 = vld [vmem:[%s1] sm:$0x1]
        %v227 = vlaneseq
        %v228 = vshrl.u32 %v227, 7
        %v229 = vsub.s32 0, %v228
        %v230 = vrot.slane %v225, %v229
        %v232 = vmul.f32 %v224, %v230
        %233 = vst [vmem:[%s216] sm:$0xff] %v232
        %v234 = vld [vmem:[%s194] sm:$0xff]
        %v235 = vld [vmem:[%s2] sm:$0x1]
        %v237 = vlaneseq
        %v238 = vshrl.u32 %v237, 7
        %v239 = vsub.s32 0, %v238
        %v240 = vrot.slane %v235, %v239
        %v242 = vmul.f32 %v234, %v240
        %243 = vst [vmem:[%s223] sm:$0xff] %v242
        %s244 = sand.u32 %s101, 1
        %s245 = scalar_lea.sflag [#allocation4], %s244
        %s246 = sand.u32 %s101, 1
        %s247 = smul.addr %s246, 8
        %s248 = scalar_lea.vmem [#allocation5], %s247
        %s249 = sand.u32 %s127, 1
        %s250 = scalar_lea.sflag [#allocation7], %s249
        %s251 = sand.u32 %s127, 1
        %s252 = smul.addr %s251, 8
        %s253 = scalar_lea.vmem [#allocation6], %s252
        // Predicated region
        $region37: #{tpu_custom_call.1} parent=31 // pred_check
          %p254 = pneg %p111
        $region38: #{tpu_custom_call.1} parent=31 // pred_check_branch
          %256 = sbr.rel (%p254) target = $region40
        $region39: #{tpu_custom_call.1} parent=31 // pred_region
          %s258 = ssub.s32 128, 128
          %259 = vsyncadd %s245, %s258
          %s260 = smul.addr %s25, 128
          %s261 = scalar_lea.hbm %s3, %s260
          %s263 = sshll.u32 %s248, 4
          %s264 = int_to_ptr.vmem [resolvable:$true] %s263
          %266 = dma.vmem_to_hbm [thread:$0]  %s264, 128, %s261, %s245
        $region40: #{tpu_custom_call.1} parent=31 // pred_fallthru
          _
        // Predicated region
        $region41: #{tpu_custom_call.1} parent=31 // pred_check
          %p267 = pneg %p137
        $region42: #{tpu_custom_call.1} parent=31 // pred_check_branch
          %269 = sbr.rel (%p267) target = $region44
        $region43: #{tpu_custom_call.1} parent=31 // pred_region
          %s271 = ssub.s32 128, 128
          %272 = vsyncadd %s250, %s271
          %s273 = smul.addr %s25, 128
          %s274 = scalar_lea.hbm %s4, %s273
          %s276 = sshll.u32 %s253, 4
          %s277 = int_to_ptr.vmem [resolvable:$true] %s276
          %279 = dma.vmem_to_hbm [thread:$0]  %s277, 128, %s274, %s250
        $region44: #{tpu_custom_call.1} parent=31 // pred_fallthru
          _
      $region32: #{tpu_custom_call.1} parent=5 // pred_fallthru
        _
      %p280 = scmp.le.s32.totalorder 2, %s20
      // Predicated region
      $region45: #{tpu_custom_call.1} parent=5 // pred_check
        %p281 = pneg %p280
      $region46: #{tpu_custom_call.1} parent=5 // pred_check_branch
        %283 = sbr.rel (%p281) target = $region48
      $region47: #{tpu_custom_call.1} parent=5 // pred_region
        %s284 = ssub.s32 %s20, 2
        // Predicated region
        $region49: #{tpu_custom_call.1} parent=47 // pred_check
          %p285 = pneg %p117
        $region50: #{tpu_custom_call.1} parent=47 // pred_check_branch
          %287 = sbr.rel (%p285) target = $region52
        $region51: #{tpu_custom_call.1} parent=47 // pred_region
          %s288 = sand.u32 %s102, 1
          %s289 = scalar_lea.sflag [#allocation4], %s288
          %s290 = sand.u32 %s102, 1
          %s291 = smul.addr %s290, 8
          %s292 = scalar_lea.vmem [#allocation5], %s291
          %293 = dma.done %s289, 128
        $region52: #{tpu_custom_call.1} parent=47 // pred_fallthru
          _
        // Predicated region
        $region53: #{tpu_custom_call.1} parent=47 // pred_check
          %p294 = pneg %p143
        $region54: #{tpu_custom_call.1} parent=47 // pred_check_branch
          %296 = sbr.rel (%p294) target = $region56
        $region55: #{tpu_custom_call.1} parent=47 // pred_region
          %s297 = sand.u32 %s128, 1
          %s298 = scalar_lea.sflag [#allocation7], %s297
          %s299 = sand.u32 %s128, 1
          %s300 = smul.addr %s299, 8
          %s301 = scalar_lea.vmem [#allocation6], %s300
          %302 = dma.done %s298, 128
        $region56: #{tpu_custom_call.1} parent=47 // pred_fallthru
          _
      $region48: #{tpu_custom_call.1} parent=5 // pred_fallthru
        _
    $region6: #{tpu_custom_call.1} parent=1 // loop_footer
      %s24 = sadd.s32 1, %s20
    $region7: #{tpu_custom_call.1} parent=1 // loop_footer_branch
      %19 = sbr.rel target = $region3
    $region8: #{tpu_custom_call.1} parent=1 // loop_exit
      _
    %303 = vsyncpa [#allocation3], 1
    %s304 = scalar_lea.sflag [#allocation3], 1
    %305 = vsyncpa %s304, 1
    %306 = vsyncpa [#allocation4], 1
    %s307 = scalar_lea.sflag [#allocation4], 1
    %308 = vsyncpa %s307, 1
    %309 = vsyncpa [#allocation7], 1
    %s310 = scalar_lea.sflag [#allocation7], 1
    %311 = vsyncpa %s310, 1

</llo_original>
